<compile_context>
chip_gen: v7x
topology: tpu7x:2x2x1
jax: 0.10.0
libtpu: 0.0.40
codegen_flags: <defaults>
</compile_context>

<pallas_src>
import functools

import jax
import jax.numpy as jnp
from jax.experimental import pallas as pl
from jax.experimental.pallas import tpu as pltpu


def _iou_count_kernel(pred_ref, gt_ref, inter_ref, total_ref):
    """Accumulate per-class intersection / (pred + gt) pixel counts.

    pred_ref  : (C, T) logits — classes on sublanes, pixels lane-dense
    gt_ref    : (1, T) integer labels (int8 / uint8 / int32)
    inter_ref : (C, 1) int32 output, resident across the HW ("arbitrary") axis
    total_ref : (C, 1) int32 output, resident across the HW ("arbitrary") axis
    """
    k = pl.program_id(2)

    @pl.when(k == 0)
    def _():
        inter_ref[...] = jnp.zeros_like(inter_ref)
        total_ref[...] = jnp.zeros_like(total_ref)

    p = pred_ref[...]                                   # (C, T) native dtype
    g = gt_ref[...].astype(jnp.int32)                   # (1, T)
    c_dim, t = p.shape

    cls = jax.lax.broadcasted_iota(jnp.int32, (c_dim, t), 0)

    # argmax over the class (sublane) axis, first-index tie-break == torch.argmax:
    # full-tile sublane max + min-index reductions (cheap XLU work, full vreg
    # occupancy) instead of per-row VPU compares.
    m = jnp.max(p, axis=0, keepdims=True)               # (1, T)
    best_idx = jnp.min(jnp.where(p == m, cls, jnp.int32(c_dim)),
                       axis=0, keepdims=True)           # (1, T)

    pred_oh = cls == best_idx                           # (C, T) bool one-hot
    gt_oh = cls == g                                    # (C, T) bool one-hot

    # Per-tile lane reductions straight into the tiny resident (C, 1) outputs:
    # no (C, T) accumulator writeback, exact int32 counts.
    inter_ref[...] += jnp.sum((pred_oh & gt_oh).astype(jnp.int32),
                              axis=1, keepdims=True)
    total_ref[...] += jnp.sum(pred_oh.astype(jnp.int32) + gt_oh.astype(jnp.int32),
                              axis=1, keepdims=True)


def mean_iou_score(prediction, ground_truth, smooth=1e-09, *,
                   tile_hw=None, hw_splits=None):
    """prediction: (B, C, H, W) float; ground_truth: (B, H, W) int labels."""
    B, C, H, W = prediction.shape
    HW = H * W

    # Free reshapes only — keep NCHW order and native dtypes (no transpose,
    # no forced label upcast when the dtype is already kernel-friendly).
    pred = prediction.reshape(B, C, HW)
    if ground_truth.dtype.name in ("int8", "uint8", "int32", "uint32"):
        gt = ground_truth.reshape(B, 1, HW)
    else:
        gt = ground_truth.reshape(B, 1, HW).astype(jnp.int32)

    itemsize = jnp.dtype(pred.dtype).itemsize
    gt_itemsize = jnp.dtype(gt.dtype).itemsize

    # Tile the HW reduction axis: ~2 MiB of logits per tile amortizes the
    # fixed per-grid-step overhead while keeping double-buffered inputs plus
    # in-kernel temporaries comfortably under the 32 MiB scoped-VMEM limit
    # that is safe on v5e / v6e / v7x alike.
    if tile_hw is None:
        target_bytes = 2 << 20
        tile_hw = max(512, (target_bytes // max(1, C * itemsize)) // 128 * 128)
    else:
        tile_hw = max(128, (tile_hw // 128) * 128)

    if tile_hw >= HW:
        tile_hw = HW                                    # full extent, no padding
        num_tiles = 1
    else:
        num_tiles = pl.cdiv(HW, tile_hw)

    # v7x has 2 TensorCores fed via the parallel grid axes.  If the batch axis
    # alone cannot keep both busy, split the HW range with a leading parallel
    # axis; each split writes its own partial counts, combined in the glue.
    if hw_splits is None:
        hw_splits = 2 if (B < 2 and num_tiles >= 2) else 1
    hw_splits = max(1, min(hw_splits, num_tiles))
    num_tiles = pl.cdiv(num_tiles, hw_splits) * hw_splits
    tiles_per_split = num_tiles // hw_splits

    padded_hw = num_tiles * tile_hw
    pad = padded_hw - HW
    if pad:
        # Zero padding is self-correcting: padded logits argmax to class 0 and
        # padded labels are class 0, so every padded pixel adds exactly 1 to
        # intersection[class 0] and 2 to total[class 0]; subtracted below.
        pred = jnp.pad(pred, ((0, 0), (0, 0), (0, pad)))
        gt = jnp.pad(gt, ((0, 0), (0, 0), (0, pad)))

    cost = pl.CostEstimate(
        flops=10 * B * padded_hw * C,
        transcendentals=0,
        bytes_accessed=B * padded_hw * (C * itemsize + gt_itemsize)
        + 2 * hw_splits * B * C * 4,
    )

    inter, total = pl.pallas_call(
        _iou_count_kernel,
        out_shape=(
            jax.ShapeDtypeStruct((hw_splits, B, C, 1), jnp.int32),
            jax.ShapeDtypeStruct((hw_splits, B, C, 1), jnp.int32),
        ),
        grid=(hw_splits, B, tiles_per_split),
        in_specs=[
            # (C, tile_hw): classes on sublanes, pixels lane-dense.
            pl.BlockSpec((None, C, tile_hw),
                         lambda s, b, k: (b, 0, s * tiles_per_split + k)),
            # (1, tile_hw): lane-dense labels, narrow dtype passed through.
            pl.BlockSpec((None, 1, tile_hw),
                         lambda s, b, k: (b, 0, s * tiles_per_split + k)),
        ],
        # Output blocks are independent of k -> stay resident across the HW
        # reduction axis and are accumulated into directly (no scratch).
        out_specs=(
            pl.BlockSpec((None, None, C, 1), lambda s, b, k: (s, b, 0, 0)),
            pl.BlockSpec((None, None, C, 1), lambda s, b, k: (s, b, 0, 0)),
        ),
        compiler_params=pltpu.CompilerParams(
            dimension_semantics=("parallel", "parallel", "arbitrary"),
            vmem_limit_bytes=32 * 1024 * 1024,
        ),
        cost_estimate=cost,
    )(pred, gt)

    # Tiny (B, C) glue — matches torch.mean(iou).item().
    inter = inter[..., 0].sum(axis=0)                   # (B, C) int32
    total = total[..., 0].sum(axis=0)                   # (B, C) int32
    if pad:
        inter = inter.at[:, 0].add(-pad)
        total = total.at[:, 0].add(-2 * pad)
    union = (total - inter).astype(jnp.float32)
    iou = (inter.astype(jnp.float32) + smooth) / (union + smooth)
    # TODO(synk): torch returns a host Python float via .item(); we return a JAX scalar.
    return jnp.mean(iou)


def _reference(prediction, ground_truth, smooth=1e-09):
    C = prediction.shape[1]
    pred_lbl = jnp.argmax(prediction, axis=1)
    pred_oh = jax.nn.one_hot(pred_lbl, C, axis=1, dtype=jnp.float32)
    gt_oh = jax.nn.one_hot(ground_truth, C, axis=1, dtype=jnp.float32)
    inter = jnp.sum(pred_oh * gt_oh, axis=(2, 3))
    union = jnp.sum(pred_oh, axis=(2, 3)) + jnp.sum(gt_oh, axis=(2, 3)) - inter
    return jnp.mean((inter + smooth) / (union + smooth))


if __name__ == "__main__":
    key = jax.random.PRNGKey(0)
    k1, k2, k3, k4, k5, k6 = jax.random.split(key, 6)

    # Case 1: canonical small shape (single HW tile, int32 labels).
    B, C, H, W = 2, 4, 16, 16
    prediction = jax.random.normal(k1, (B, C, H, W), dtype=jnp.float32)
    ground_truth = jax.random.randint(k2, (B, H, W), minval=0, maxval=C,
                                      dtype=jnp.int32)
    out = jax.block_until_ready(mean_iou_score(prediction, ground_truth))
    ref = _reference(prediction, ground_truth)
    assert jnp.allclose(out, ref, atol=1e-6, rtol=1e-6), (out, ref)

    # Case 2: multi-tile HW reduction + zero-padding correction path.
    B2, C2, H2, W2 = 2, 4, 48, 48           # HW = 2304 -> 5 tiles of 512 (padded)
    prediction2 = jax.random.normal(k3, (B2, C2, H2, W2), dtype=jnp.float32)
    ground_truth2 = jax.random.randint(k4, (B2, H2, W2), minval=0, maxval=C2,
                                       dtype=jnp.int32)
    out2 = jax.block_until_ready(
        mean_iou_score(prediction2, ground_truth2, tile_hw=512))
    ref2 = _reference(prediction2, ground_truth2)
    assert jnp.allclose(out2, ref2, atol=1e-6, rtol=1e-6), (out2, ref2)

    # Case 3: B=1 (exercises the HW-split parallel axis), odd class count,
    # int8 labels passed straight through, padding correction.
    B3, C3, H3, W3 = 1, 5, 40, 40           # HW = 1600 -> 4 tiles of 512, 2 splits
    prediction3 = jax.random.normal(k5, (B3, C3, H3, W3), dtype=jnp.float32)
    ground_truth3 = jax.random.randint(k6, (B3, H3, W3), minval=0, maxval=C3,
                                       dtype=jnp.int32).astype(jnp.int8)
    out3 = jax.block_until_ready(
        mean_iou_score(prediction3, ground_truth3, tile_hw=512))
    ref3 = _reference(prediction3, ground_truth3)
    assert jnp.allclose(out3, ref3, atol=1e-6, rtol=1e-6), (out3, ref3)

    print("KERNEL_OK")
</pallas_src>

<mosaic_0001>
module attributes {stable_mosaic.version = 11 : i64} {
  func.func @_iou_count_kernel(%arg0: i32, %arg1: i32, %arg2: i32, %arg3: memref<1x4x256xf32, #tpu.memory_space<vmem>>, %arg4: memref<1x1x256xi32, #tpu.memory_space<vmem>>, %arg5: memref<1x1x4x1xi32, #tpu.memory_space<vmem>>, %arg6: memref<1x1x4x1xi32, #tpu.memory_space<vmem>>) attributes {dimension_semantics = [#tpu.dimension_semantics<parallel>, #tpu.dimension_semantics<parallel>, #tpu.dimension_semantics<arbitrary>], iteration_bounds = array<i64: 1, 2, 1>, scalar_prefetch = 0 : i64, scratch_operands = 0 : i64, tpu.core_type = #tpu.core_type<tc>, window_params = [{transform_indices = @transform_0, window_bounds = array<i64: 1, 4, 256>}, {transform_indices = @transform_1, window_bounds = array<i64: 1, 1, 256>}, {transform_indices = @transform_2, window_bounds = array<i64: 1, 1, 4, 1>}, {transform_indices = @transform_3, window_bounds = array<i64: 1, 1, 4, 1>}]} {
    %c0_i32 = arith.constant 0 : i32
    %0 = arith.cmpi eq, %arg2, %c0_i32 : i32
    %1 = arith.extui %0 : i1 to i32
    %c0_i32_0 = arith.constant 0 : i32
    %2 = arith.cmpi ne, %1, %c0_i32_0 : i32
    scf.if %2 {
      %c0_i32_25 = arith.constant 0 : i32
      %41 = vector.broadcast %c0_i32_25 : i32 to vector<4x1xi32>
      %c0_26 = arith.constant 0 : index
      %c0_27 = arith.constant 0 : index
      %c0_28 = arith.constant 0 : index
      %c0_29 = arith.constant 0 : index
      %42 = vector.load %arg5[%c0_26, %c0_27, %c0_28, %c0_29] : memref<1x1x4x1xi32, #tpu.memory_space<vmem>>, vector<1x1x4x1xi32>
      %43 = vector.shape_cast %42 : vector<1x1x4x1xi32> to vector<4x1xi32>
      %44 = vector.shape_cast %41 : vector<4x1xi32> to vector<1x1x4x1xi32>
      tpu.vector_store %arg5[%c0_26, %c0_27, %c0_28, %c0_29], %44 {strides = array<i32>} : memref<1x1x4x1xi32, #tpu.memory_space<vmem>>, vector<1x1x4x1xi32>,
      %c0_i32_30 = arith.constant 0 : i32
      %45 = vector.broadcast %c0_i32_30 : i32 to vector<4x1xi32>
      %c0_31 = arith.constant 0 : index
      %c0_32 = arith.constant 0 : index
      %c0_33 = arith.constant 0 : index
      %c0_34 = arith.constant 0 : index
      %46 = vector.load %arg6[%c0_31, %c0_32, %c0_33, %c0_34] : memref<1x1x4x1xi32, #tpu.memory_space<vmem>>, vector<1x1x4x1xi32>
      %47 = vector.shape_cast %46 : vector<1x1x4x1xi32> to vector<4x1xi32>
      %48 = vector.shape_cast %45 : vector<4x1xi32> to vector<1x1x4x1xi32>
      tpu.vector_store %arg6[%c0_31, %c0_32, %c0_33, %c0_34], %48 {strides = array<i32>} : memref<1x1x4x1xi32, #tpu.memory_space<vmem>>, vector<1x1x4x1xi32>,
    } else {
    }
    %c0 = arith.constant 0 : index
    %c0_1 = arith.constant 0 : index
    %c0_2 = arith.constant 0 : index
    %3 = vector.load %arg3[%c0, %c0_1, %c0_2] : memref<1x4x256xf32, #tpu.memory_space<vmem>>, vector<1x4x256xf32>
    %4 = vector.shape_cast %3 : vector<1x4x256xf32> to vector<4x256xf32>
    %c0_3 = arith.constant 0 : index
    %c0_4 = arith.constant 0 : index
    %c0_5 = arith.constant 0 : index
    %5 = vector.load %arg4[%c0_3, %c0_4, %c0_5] : memref<1x1x256xi32, #tpu.memory_space<vmem>>, vector<1x1x256xi32>
    %6 = vector.shape_cast %5 : vector<1x1x256xi32> to vector<1x256xi32>
    %7 = tpu.iota {dimensions = array<i32: 0>} : vector<4x256xi32>
    %cst = arith.constant dense<0xFF800000> : vector<256xf32>
    %8 = vector.multi_reduction <maximumf>, %4, %cst [0] : vector<4x256xf32> to vector<256xf32>
    %9 = vector.shape_cast %8 : vector<256xf32> to vector<1x256xf32>
    %10 = vector.broadcast %9 : vector<1x256xf32> to vector<4x256xf32>
    %11 = arith.cmpf oeq, %4, %10 : vector<4x256xf32>
    %c4_i32 = arith.constant 4 : i32
    %12 = vector.broadcast %c4_i32 : i32 to vector<4x256xi32>
    %13 = arith.select %11, %7, %12 : vector<4x256xi1>, vector<4x256xi32>
    %cst_6 = arith.constant dense<2147483647> : vector<256xi32>
    %14 = vector.multi_reduction <minsi>, %13, %cst_6 [0] : vector<4x256xi32> to vector<256xi32>
    %15 = vector.shape_cast %14 : vector<256xi32> to vector<1x256xi32>
    %16 = vector.broadcast %15 : vector<1x256xi32> to vector<4x256xi32>
    %17 = arith.cmpi eq, %7, %16 : vector<4x256xi32>
    %18 = vector.broadcast %6 : vector<1x256xi32> to vector<4x256xi32>
    %19 = arith.cmpi eq, %7, %18 : vector<4x256xi32>
    %c0_7 = arith.constant 0 : index
    %c0_8 = arith.constant 0 : index
    %c0_9 = arith.constant 0 : index
    %c0_10 = arith.constant 0 : index
    %20 = vector.load %arg5[%c0_7, %c0_8, %c0_9, %c0_10] : memref<1x1x4x1xi32, #tpu.memory_space<vmem>>, vector<1x1x4x1xi32>
    %21 = vector.shape_cast %20 : vector<1x1x4x1xi32> to vector<4x1xi32>
    %22 = arith.andi %17, %19 : vector<4x256xi1>
    %23 = arith.extui %22 : vector<4x256xi1> to vector<4x256xi32>
    %cst_11 = arith.constant dense<0> : vector<4xi32>
    %24 = vector.multi_reduction <add>, %23, %cst_11 [1] : vector<4x256xi32> to vector<4xi32>
    %25 = vector.shape_cast %24 : vector<4xi32> to vector<4x1xi32>
    %26 = arith.addi %21, %25 : vector<4x1xi32>
    %c0_12 = arith.constant 0 : index
    %c0_13 = arith.constant 0 : index
    %c0_14 = arith.constant 0 : index
    %c0_15 = arith.constant 0 : index
    %27 = vector.load %arg5[%c0_12, %c0_13, %c0_14, %c0_15] : memref<1x1x4x1xi32, #tpu.memory_space<vmem>>, vector<1x1x4x1xi32>
    %28 = vector.shape_cast %27 : vector<1x1x4x1xi32> to vector<4x1xi32>
    %29 = vector.shape_cast %26 : vector<4x1xi32> to vector<1x1x4x1xi32>
    tpu.vector_store %arg5[%c0_12, %c0_13, %c0_14, %c0_15], %29 {strides = array<i32>} : memref<1x1x4x1xi32, #tpu.memory_space<vmem>>, vector<1x1x4x1xi32>,
    %c0_16 = arith.constant 0 : index
    %c0_17 = arith.constant 0 : index
    %c0_18 = arith.constant 0 : index
    %c0_19 = arith.constant 0 : index
    %30 = vector.load %arg6[%c0_16, %c0_17, %c0_18, %c0_19] : memref<1x1x4x1xi32, #tpu.memory_space<vmem>>, vector<1x1x4x1xi32>
    %31 = vector.shape_cast %30 : vector<1x1x4x1xi32> to vector<4x1xi32>
    %32 = arith.extui %17 : vector<4x256xi1> to vector<4x256xi32>
    %33 = arith.extui %19 : vector<4x256xi1> to vector<4x256xi32>
    %34 = arith.addi %32, %33 : vector<4x256xi32>
    %cst_20 = arith.constant dense<0> : vector<4xi32>
    %35 = vector.multi_reduction <add>, %34, %cst_20 [1] : vector<4x256xi32> to vector<4xi32>
    %36 = vector.shape_cast %35 : vector<4xi32> to vector<4x1xi32>
    %37 = arith.addi %31, %36 : vector<4x1xi32>
    %c0_21 = arith.constant 0 : index
    %c0_22 = arith.constant 0 : index
    %c0_23 = arith.constant 0 : index
    %c0_24 = arith.constant 0 : index
    %38 = vector.load %arg6[%c0_21, %c0_22, %c0_23, %c0_24] : memref<1x1x4x1xi32, #tpu.memory_space<vmem>>, vector<1x1x4x1xi32>
    %39 = vector.shape_cast %38 : vector<1x1x4x1xi32> to vector<4x1xi32>
    %40 = vector.shape_cast %37 : vector<4x1xi32> to vector<1x1x4x1xi32>
    tpu.vector_store %arg6[%c0_21, %c0_22, %c0_23, %c0_24], %40 {strides = array<i32>} : memref<1x1x4x1xi32, #tpu.memory_space<vmem>>, vector<1x1x4x1xi32>,
    return
  }
  func.func @transform_0(%arg0: i32, %arg1: i32, %arg2: i32) -> (i32, i32, i32) {
    %c1_i32 = arith.constant 1 : i32
    %0 = arith.muli %arg0, %c1_i32 : i32
    %1 = arith.addi %0, %arg2 : i32
    %c0_i32 = arith.constant 0 : i32
    %c0_i32_0 = arith.constant 0 : i32
    return %arg1, %c0_i32, %1 : i32, i32, i32
  }
  func.func @transform_1(%arg0: i32, %arg1: i32, %arg2: i32) -> (i32, i32, i32) {
    %c1_i32 = arith.constant 1 : i32
    %0 = arith.muli %arg0, %c1_i32 : i32
    %1 = arith.addi %0, %arg2 : i32
    %c0_i32 = arith.constant 0 : i32
    %c0_i32_0 = arith.constant 0 : i32
    return %arg1, %c0_i32, %1 : i32, i32, i32
  }
  func.func @transform_2(%arg0: i32, %arg1: i32, %arg2: i32) -> (i32, i32, i32, i32) {
    %c0_i32 = arith.constant 0 : i32
    %c0_i32_0 = arith.constant 0 : i32
    %c0_i32_1 = arith.constant 0 : i32
    return %arg0, %arg1, %c0_i32, %c0_i32_0 : i32, i32, i32, i32
  }
  func.func @transform_3(%arg0: i32, %arg1: i32, %arg2: i32) -> (i32, i32, i32, i32) {
    %c0_i32 = arith.constant 0 : i32
    %c0_i32_0 = arith.constant 0 : i32
    %c0_i32_1 = arith.constant 0 : i32
    return %arg0, %arg1, %c0_i32, %c0_i32_0 : i32, i32, i32, i32
  }
}

</mosaic_0001>

<llo_original>
// kernel: tpu_custom_call.1
$region0: #{tpu_custom_call.1}
  #allocation0 [shape = 'u32[]', space=smem, size = 0x4, offset = 0x4, fixed_abs, tag = 'smem constant byte address 0x4 - core index']
  #allocation1 [shape = 'u32[144,128]{1,0:T(1,128)}', space=vmem, size = 0x12000, scoped, tag = 'internal scratch']
  %s0 = inlined_call_operand.hbm [shape: f32[2,4,256], index: 0, kind: input, shape index: {}]
  %s1 = inlined_call_operand.hbm [shape: s32[2,1,256], index: 1, kind: input, shape index: {}]
  %s2 = inlined_call_operand.vmem [shape: s32[1,2,4,1], index: 2, kind: output, shape index: {0}]
  %s3 = inlined_call_operand.vmem [shape: s32[1,2,4,1], index: 3, kind: output, shape index: {1}]
  %4 = xla_tuple %s2, %s3
  %s5 = sld [smem:[#allocation0]]
  $region61: #{tpu_custom_call.1} parent=0
    _
  %s7 = ssub.s32 1, %s5
  %s8 = scalar_select 0, %s7, %s5
  $region1: #{tpu_custom_call.1} parent=0
    #allocation2 [shape = 'u8[8192]{0}', space=vmem, size = 0x2000, scoped, tag = 'input window, operand 0']
    #allocation3 [shape = 's32[2]{0}', space=sflag, size = 0x8, scoped, tag = 'scoped memory for tpu_custom_call.1']
    #allocation4 [shape = 'u8[2048]{0}', space=vmem, size = 0x800, scoped, tag = 'input window, operand 1']
    #allocation5 [shape = 's32[2]{0}', space=sflag, size = 0x8, scoped, tag = 'scoped memory for tpu_custom_call.1']
    %9 = vsyncpa [#allocation3], 0
    %s10 = scalar_lea.sflag [#allocation3], 1
    %11 = vsyncpa %s10, 0
    %12 = vsyncpa [#allocation5], 0
    %s13 = scalar_lea.sflag [#allocation5], 1
    %14 = vsyncpa %s13, 0
    loop: start=0, step=1, limit=4
    $region2: #{tpu_custom_call.1} parent=1 // loop_pre_header
      _
    $region3: #{tpu_custom_call.1} parent=1 // loop_header
      %s16 = sphi 0, %s20
      %p17 = scmp.ge.s32.totalorder %s16, 4
      %s23 = sphi 0, %s42
      %s24 = sphi 0, %s38
      %s25 = sphi 0, %s34
      %s26 = sphi 0, %s23
      %s27 = sphi 0, %s24
      %s28 = sphi 0, %s25
      %s29 = sphi 0, %s26
      %s30 = sphi 0, %s27
      %s31 = sphi 0, %s28
      %s49 = sphi 0, %s51
      %s52 = sphi 0, %s49
      %s53 = sphi 0, %s52
      %s69 = sphi 0, %s53
      %s79 = sphi 0, %s81
      %s82 = sphi 0, %s79
      %s83 = sphi 0, %s82
      %s99 = sphi 0, %s83
      %s107 = sphi 0, %s109
      %s110 = sphi 0, %s107
      %s111 = sphi 0, %s110
      %s127 = sphi 0, %s111
      %s135 = sphi 0, %s137
      %s138 = sphi 0, %s135
      %s139 = sphi 0, %s138
      %s155 = sphi 0, %s139
    $region4: #{tpu_custom_call.1} parent=1 // loop_header_branch
      %19 = sbr.rel (%p17) target = $region8
    $region5: #{tpu_custom_call.1} parent=1 // loop_body
      %s21 = ssub.s32 %s16, 1
      %s22 = ssub.s32 %s16, 2
      %s32 = sadd.s32 1, %s25
      %p33 = scmp.ge.s32.totalorder %s32, 1
      %s34 = scalar_select %p33, 0, %s32
      %s35 = sadd.s32 1, %s24
      %s36 = scalar_select %p33, %s35, %s24
      %p37 = scmp.ge.s32.totalorder %s36, 2
      %s38 = scalar_select %p37, 0, %s36
      %s39 = sadd.s32 1, %s23
      %s40 = scalar_select %p37, %s39, %s23
      %p41 = scmp.ge.s32.totalorder %s40, 1
      %s42 = scalar_select %p41, 0, %s40
      %s43 = sadd.s32 %s23, %s25
      %s44 = sadd.s32 %s42, %s34
      %s45 = ssub.s32 %s24, %s38
      %s46 = ssub.s32 %s43, %s44
      %s47 = sor.u32 %s45, %s46
      %p48 = scmp.eq.s32.totalorder %s47, 0
      %s50 = sadd.s32 %s49, 1
      %s51 = scalar_select %p48, %s49, %s50
      %p54 = pneg %p48
      %p55 = scmp.eq.s32.totalorder %s16, 1
      %p56 = por %p54, %p55
      %p57 = scmp.ne.s32.totalorder %s49, %s52
      %p58 = scmp.eq.s32.totalorder %s16, 0
      %p59 = por %p57, %p58
      %p60 = scmp.ne.s32.totalorder %s49, %s52
      %p61 = scmp.eq.s32.totalorder %s21, 1
      %p62 = por %p60, %p61
      %p63 = scmp.ne.s32.totalorder %s52, %s53
      %p64 = scmp.eq.s32.totalorder %s21, 0
      %p65 = por %p63, %p64
      %p66 = scmp.ne.s32.totalorder %s52, %s53
      %p67 = scmp.eq.s32.totalorder %s22, 1
      %p68 = por %p66, %p67
      %p70 = scmp.ne.s32.totalorder %s53, %s69
      %p71 = scmp.eq.s32.totalorder %s22, 0
      %p72 = por %p70, %p71
      %s73 = sadd.s32 %s23, %s25
      %s74 = sadd.s32 %s42, %s34
      %s75 = ssub.s32 %s24, %s38
      %s76 = ssub.s32 %s73, %s74
      %s77 = sor.u32 %s75, %s76
      %p78 = scmp.eq.s32.totalorder %s77, 0
      %s80 = sadd.s32 %s79, 1
      %s81 = scalar_select %p78, %s79, %s80
      %p84 = pneg %p78
      %p85 = scmp.eq.s32.totalorder %s16, 1
      %p86 = por %p84, %p85
      %p87 = scmp.ne.s32.totalorder %s79, %s82
      %p88 = scmp.eq.s32.totalorder %s16, 0
      %p89 = por %p87, %p88
      %p90 = scmp.ne.s32.totalorder %s79, %s82
      %p91 = scmp.eq.s32.totalorder %s21, 1
      %p92 = por %p90, %p91
      %p93 = scmp.ne.s32.totalorder %s82, %s83
      %p94 = scmp.eq.s32.totalorder %s21, 0
      %p95 = por %p93, %p94
      %p96 = scmp.ne.s32.totalorder %s82, %s83
      %p97 = scmp.eq.s32.totalorder %s22, 1
      %p98 = por %p96, %p97
      %p100 = scmp.ne.s32.totalorder %s83, %s99
      %p101 = scmp.eq.s32.totalorder %s22, 0
      %p102 = por %p100, %p101
      %s103 = ssub.s32 %s23, %s42
      %s104 = ssub.s32 %s24, %s38
      %s105 = sor.u32 %s103, %s104
      %p106 = scmp.eq.s32.totalorder %s105, 0
      %s108 = sadd.s32 %s107, 1
      %s109 = scalar_select %p106, %s107, %s108
      %p112 = pneg %p106
      %p113 = scmp.eq.s32.totalorder %s16, 1
      %p114 = por %p112, %p113
      %p115 = scmp.ne.s32.totalorder %s107, %s110
      %p116 = scmp.eq.s32.totalorder %s16, 0
      %p117 = por %p115, %p116
      %p118 = scmp.ne.s32.totalorder %s107, %s110
      %p119 = scmp.eq.s32.totalorder %s21, 1
      %p120 = por %p118, %p119
      %p121 = scmp.ne.s32.totalorder %s110, %s111
      %p122 = scmp.eq.s32.totalorder %s21, 0
      %p123 = por %p121, %p122
      %p124 = scmp.ne.s32.totalorder %s110, %s111
      %p125 = scmp.eq.s32.totalorder %s22, 1
      %p126 = por %p124, %p125
      %p128 = scmp.ne.s32.totalorder %s111, %s127
      %p129 = scmp.eq.s32.totalorder %s22, 0
      %p130 = por %p128, %p129
      %s131 = ssub.s32 %s23, %s42
      %s132 = ssub.s32 %s24, %s38
      %s133 = sor.u32 %s131, %s132
      %p134 = scmp.eq.s32.totalorder %s133, 0
      %s136 = sadd.s32 %s135, 1
      %s137 = scalar_select %p134, %s135, %s136
      %p140 = pneg %p134
      %p141 = scmp.eq.s32.totalorder %s16, 1
      %p142 = por %p140, %p141
      %p143 = scmp.ne.s32.totalorder %s135, %s138
      %p144 = scmp.eq.s32.totalorder %s16, 0
      %p145 = por %p143, %p144
      %p146 = scmp.ne.s32.totalorder %s135, %s138
      %p147 = scmp.eq.s32.totalorder %s21, 1
      %p148 = por %p146, %p147
      %p149 = scmp.ne.s32.totalorder %s138, %s139
      %p150 = scmp.eq.s32.totalorder %s21, 0
      %p151 = por %p149, %p150
      %p152 = scmp.ne.s32.totalorder %s138, %s139
      %p153 = scmp.eq.s32.totalorder %s22, 1
      %p154 = por %p152, %p153
      %p156 = scmp.ne.s32.totalorder %s139, %s155
      %p157 = scmp.eq.s32.totalorder %s22, 0
      %p158 = por %p156, %p157
      %p159 = scmp.le.s32.totalorder 1, %s16
      %p160 = scmp.lt.s32.totalorder %s16, 3
      %p161 = pnand %p159, %p160
      %p162 = pneg %p161
      // Predicated region
      $region9: #{tpu_custom_call.1} parent=5 // pred_check
        _
      $region10: #{tpu_custom_call.1} parent=5 // pred_check_branch
        %164 = sbr.rel (%p161) target = $region12
      $region11: #{tpu_custom_call.1} parent=5 // pred_region
        %s165 = ssub.s32 %s16, 1
      $region12: #{tpu_custom_call.1} parent=5 // pred_fallthru
        _
      %p166 = scmp.lt.s32.totalorder %s16, 2
      // Predicated region
      $region13: #{tpu_custom_call.1} parent=5 // pred_check
        %p167 = pneg %p166
      $region14: #{tpu_custom_call.1} parent=5 // pred_check_branch
        %169 = sbr.rel (%p167) target = $region16
      $region15: #{tpu_custom_call.1} parent=5 // pred_region
        // Predicated region
        $region17: #{tpu_custom_call.1} parent=15 // pred_check
          %p170 = pneg %p59
        $region18: #{tpu_custom_call.1} parent=15 // pred_check_branch
          %172 = sbr.rel (%p170) target = $region20
        $region19: #{tpu_custom_call.1} parent=15 // pred_region
          %s173 = sand.u32 %s49, 1
          %s174 = scalar_lea.sflag [#allocation3], %s173
          %s175 = sand.u32 %s49, 1
          %s176 = smul.addr %s175, 8
          %s177 = scalar_lea.vmem [#allocation2], %s176
          %s178 = sadd.s32 %s23, %s25
          %s179 = smul.u32 2, %s178
          %s181 = ssub.s32 128, 128
          %182 = vsyncadd %s174, %s181
          %s183 = smul.addr %s24, 2
          %s184 = sadd.s32 %s179, %s183
          %s185 = smul.addr %s184, 64
          %s186 = scalar_lea.hbm %s0, %s185
          %s188 = sshll.u32 %s177, 4
          %s189 = int_to_ptr.vmem [resolvable:$true] %s188
          %191 = dma.hbm_to_vmem [thread:$0]  %s186, 128, %s189, %s174
        $region20: #{tpu_custom_call.1} parent=15 // pred_fallthru
          _
        // Predicated region
        $region21: #{tpu_custom_call.1} parent=15 // pred_check
          %p192 = pneg %p89
        $region22: #{tpu_custom_call.1} parent=15 // pred_check_branch
          %194 = sbr.rel (%p192) target = $region24
        $region23: #{tpu_custom_call.1} parent=15 // pred_region
          %s195 = sand.u32 %s79, 1
          %s196 = scalar_lea.sflag [#allocation5], %s195
          %s197 = sand.u32 %s79, 1
          %s198 = smul.addr %s197, 2
          %s199 = scalar_lea.vmem [#allocation4], %s198
          %s200 = sadd.s32 %s23, %s25
          %s201 = smul.u32 2, %s200
          %s203 = ssub.s32 32, 32
          %204 = vsyncadd %s196, %s203
          %s205 = smul.addr %s24, 2
          %s206 = sadd.s32 %s201, %s205
          %s207 = smul.addr %s206, 16
          %s208 = scalar_lea.hbm %s1, %s207
          %s210 = sshll.u32 %s199, 4
          %s211 = int_to_ptr.vmem [resolvable:$true] %s210
          %213 = dma.hbm_to_vmem [thread:$0]  %s208, 32, %s211, %s196
        $region24: #{tpu_custom_call.1} parent=15 // pred_fallthru
          _
      $region16: #{tpu_custom_call.1} parent=5 // pred_fallthru
        _
      %p214 = scmp.le.s32.totalorder 1, %s16
      %p215 = scmp.lt.s32.totalorder %s16, 3
      %p216 = pnand %p214, %p215
      %p217 = pneg %p216
      // Predicated region
      $region25: #{tpu_custom_call.1} parent=5 // pred_check
        _
      $region26: #{tpu_custom_call.1} parent=5 // pred_check_branch
        %219 = sbr.rel (%p216) target = $region28
      $region27: #{tpu_custom_call.1} parent=5 // pred_region
        %s220 = ssub.s32 %s16, 1
        %s221 = sand.u32 %s52, 1
        %s222 = scalar_lea.sflag [#allocation3], %s221
        %s223 = sand.u32 %s52, 1
        %s224 = smul.addr %s223, 8
        %s225 = scalar_lea.vmem [#allocation2], %s224
        // Predicated region
        $region29: #{tpu_custom_call.1} parent=27 // pred_check
          %p226 = pneg %p65
        $region30: #{tpu_custom_call.1} parent=27 // pred_check_branch
          %228 = sbr.rel (%p226) target = $region32
        $region31: #{tpu_custom_call.1} parent=27 // pred_region
          %229 = dma.done %s222, 128
        $region32: #{tpu_custom_call.1} parent=27 // pred_fallthru
          _
        %s230 = sand.u32 %s82, 1
        %s231 = scalar_lea.sflag [#allocation5], %s230
        %s232 = sand.u32 %s82, 1
        %s233 = smul.addr %s232, 2
        %s234 = scalar_lea.vmem [#allocation4], %s233
        // Predicated region
        $region33: #{tpu_custom_call.1} parent=27 // pred_check
          %p235 = pneg %p95
        $region34: #{tpu_custom_call.1} parent=27 // pred_check_branch
          %237 = sbr.rel (%p235) target = $region36
        $region35: #{tpu_custom_call.1} parent=27 // pred_region
          %238 = dma.done %s231, 32
        $region36: #{tpu_custom_call.1} parent=27 // pred_fallthru
          _
        %s239 = sand.u32 %s52, 1
        %s240 = scalar_lea.sflag [#allocation3], %s239
        %s241 = sand.u32 %s52, 1
        %s242 = smul.addr %s241, 8
        %s243 = scalar_lea.vmem [#allocation2], %s242
        %p244 = pneg %p65
        %p245 = pneg %p62
        %s246 = sand.u32 %s82, 1
        %s247 = scalar_lea.sflag [#allocation5], %s246
        %s248 = sand.u32 %s82, 1
        %s249 = smul.addr %s248, 2
        %s250 = scalar_lea.vmem [#allocation4], %s249
        %p251 = pneg %p95
        %p252 = pneg %p92
        %p253 = pneg %p123
        %p254 = pneg %p120
        %p255 = scmp.lt.s32.totalorder %s26, 0
        %s256 = scalar_select %p255, %s26, 0
        %p257 = scmp.lt.s32.totalorder %s27, 1
        %s258 = scalar_select %p257, %s27, 1
        %s259 = smul.addr %s256, 2
        %s260 = sadd.s32 %s258, %s259
        %s261 = smul.addr %s260, 4
        %s262 = scalar_lea.vmem %s2, %s261
        %p263 = pneg %p151
        %p264 = pneg %p148
        %p265 = scmp.lt.s32.totalorder %s26, 0
        %s266 = scalar_select %p265, %s26, 0
        %p267 = scmp.lt.s32.totalorder %s27, 1
        %s268 = scalar_select %p267, %s27, 1
        %s269 = smul.addr %s266, 2
        %s270 = sadd.s32 %s268, %s269
        %s271 = smul.addr %s270, 4
        %s272 = scalar_lea.vmem %s3, %s271
        %s273 = sadd.s32 %s26, %s28
        %s274 = smul.u32 2, %s273
        %s275 = sadd.s32 %s26, %s28
        %s276 = smul.u32 2, %s275
        %p277 = scmp.lt.s32.totalorder %s26, 0
        %s278 = scalar_select %p277, %s26, 0
        %p279 = scmp.lt.s32.totalorder %s27, 1
        %s280 = scalar_select %p279, %s27, 1
        %s281 = smul.addr %s278, 2
        %s282 = sadd.s32 %s280, %s281
        %s283 = smul.addr %s282, 4
        %s284 = scalar_lea.vmem %s2, %s283
        %p285 = scmp.lt.s32.totalorder %s26, 0
        %s286 = scalar_select %p285, %s26, 0
        %p287 = scmp.lt.s32.totalorder %s27, 1
        %s288 = scalar_select %p287, %s27, 1
        %s289 = smul.addr %s286, 2
        %s290 = sadd.s32 %s288, %s289
        %s291 = smul.addr %s290, 4
        %s292 = scalar_lea.vmem %s3, %s291
        %p293 = scmp.eq.s32.totalorder %s28, 0
        // Predicated region
        $region37: #{tpu_custom_call.1} parent=27 // pred_check
          %p294 = pneg %p293
        $region38: #{tpu_custom_call.1} parent=27 // pred_check_branch
          %296 = sbr.rel (%p294) target = $region40
        $region39: #{tpu_custom_call.1} parent=27 // pred_region
          %vm297 = vcmask 3072
          %298 = vst.msk [vmem:[%s284] sm:$0xf] %vm297, 0
          %299 = vst.msk [vmem:[%s292] sm:$0xf] %vm297, 0
        $region40: #{tpu_custom_call.1} parent=27 // pred_fallthru
          _
        %v300 = vld [vmem:[%s225] sm:$0xff]
        %v301 = vld [vmem:[%s234] sm:$0x3]
        %v302 = vlaneseq
        %v303 = vshrl.u32 %v302, 7
        %v305 = vcombine.high %v300, %v300
        %vm307 = vcmask 1043456
        %v308 = vsel %vm307, %v300, -inf
        %v309 = vrot.slane %v308, 4
        %v310 = vmax.f32 %v308, %v309
        %v311 = vrot.slane %v310, 2
        %v312 = vmax.f32 %v310, %v311
        %v313 = vrot.slane %v312, 1
        %v314 = vmax.f32 %v312, %v313
        %v315 = vsel %vm307, %v305, -inf
        %v316 = vrot.slane %v315, 4
        %v317 = vmax.f32 %v315, %v316
        %v318 = vrot.slane %v317, 2
        %v319 = vmax.f32 %v317, %v318
        %v320 = vrot.slane %v319, 1
        %v321 = vmax.f32 %v319, %v320
        %v324 = vcombine.low %v314, %v321
        %vm326 = vcmp.eq.f32.partialorder %v300, %v324
        %v328 = vunpack.c.l.s4 839922192
        %v329 = vunpack.c.0.s8 %v328
        %v330 = vlaneseq
        %v331 = vshrl.u32 %v330, 7
        %v332 = vsub.s32 %v329, %v331
        %v333 = vrot.slane %v303, %v332
        %v334 = vsel %vm326, %v333, 4
        %v335 = vcombine.high %v334, %v334
        %v336 = vsel %vm307, %v334, 2147483647
        %v337 = vrot.slane %v336, 4
        %vm338 = vcmp.lt.s32.totalorder %v336, %v337
        %v339 = vsel %vm338, %v336, %v337
        %v340 = vrot.slane %v339, 2
        %vm341 = vcmp.lt.s32.totalorder %v339, %v340
        %v342 = vsel %vm341, %v339, %v340
        %v343 = vrot.slane %v342, 1
        %vm344 = vcmp.lt.s32.totalorder %v342, %v343
        %v345 = vsel %vm344, %v342, %v343
        %v346 = vsel %vm307, %v335, 2147483647
        %v347 = vrot.slane %v346, 4
        %vm348 = vcmp.lt.s32.totalorder %v346, %v347
        %v349 = vsel %vm348, %v346, %v347
        %v350 = vrot.slane %v349, 2
        %vm351 = vcmp.lt.s32.totalorder %v349, %v350
        %v352 = vsel %vm351, %v349, %v350
        %v353 = vrot.slane %v352, 1
        %vm354 = vcmp.lt.s32.totalorder %v352, %v353
        %v355 = vsel %vm354, %v352, %v353
        %vm356 = vcmp.eq.s32.totalorder %v303, %v345
        %vm357 = vcmp.eq.s32.totalorder %v303, %v355
        %v358 = vlaneseq
        %v359 = vshrl.u32 %v358, 7
        %v360 = vsub.s32 0, %v359
        %v361 = vrot.slane %v301, %v360
        %v362 = vlaneseq
        %v363 = vshrl.u32 %v362, 7
        %v364 = vsub.s32 1, %v363
        %v365 = vrot.slane %v301, %v364
        %vm366 = vcmp.eq.s32.totalorder %v303, %v361
        %vm367 = vcmp.eq.s32.totalorder %v303, %v365
        %v368 = vld [vmem:[%s284] sm:$0xf]
        %vm369 = vmand %vm356, %vm366
        %vm370 = vmand %vm357, %vm367
        %v371 = vsel %vm369, 1, 0
        %v372 = vsel %vm370, 1, 0
        %v373 = vsel %vm307, %v371, 0
        %v374 = vsel %vm307, %v372, 0
        %v375 = vadd.s32 %v373, %v374
        %v376 = vand.u32 %v375, 65535
        %v377 = vshrl.u32 %v375, 16
        %v378 = vcvt.s32.f32 %v376
        %v379 = vcvt.s32.f32 %v377
        %380 = vadd.xlane.f32.xlu0 %v378
        %v381 = vpop.xlane.xlu0 %380
        %382 = vadd.xlane.f32.xlu0 %v379
        %v383 = vpop.xlane.xlu0 %382
        %v384 = vcvt.f32.s32 %v381
        %v385 = vcvt.f32.s32 %v383
        %v386 = vshll.u32 %v385, 16
        %v387 = vadd.s32 %v386, %v384
        %v388 = vadd.s32 %v368, %v387
        %vm389 = vcmask 3072
        %390 = vst.msk [vmem:[%s284] sm:$0xf] %vm389, %v388
        %v391 = vld [vmem:[%s292] sm:$0xf]
        %v392 = vsel %vm356, 1, 0
        %v393 = vsel %vm357, 1, 0
        %v394 = vsel %vm366, 1, 0
        %v395 = vsel %vm367, 1, 0
        %v396 = vadd.s32 %v392, %v394
        %v397 = vadd.s32 %v393, %v395
        %v398 = vsel %vm307, %v396, 0
        %v399 = vsel %vm307, %v397, 0
        %v400 = vadd.s32 %v398, %v399
        %v401 = vand.u32 %v400, 65535
        %v402 = vshrl.u32 %v400, 16
        %v403 = vcvt.s32.f32 %v401
        %v404 = vcvt.s32.f32 %v402
        %405 = vadd.xlane.f32.xlu0 %v403
        %v406 = vpop.xlane.xlu0 %405
        %407 = vadd.xlane.f32.xlu0 %v404
        %v408 = vpop.xlane.xlu0 %407
        %v409 = vcvt.f32.s32 %v406
        %v410 = vcvt.f32.s32 %v408
        %v411 = vshll.u32 %v410, 16
        %v412 = vadd.s32 %v411, %v409
        %v413 = vadd.s32 %v391, %v412
        %414 = vst.msk [vmem:[%s292] sm:$0xf] %vm389, %v413
        %p415 = scmp.lt.s32.totalorder %s26, 0
        %s416 = scalar_select %p415, %s26, 0
        %p417 = scmp.lt.s32.totalorder %s27, 1
        %s418 = scalar_select %p417, %s27, 1
        %s419 = smul.addr %s416, 2
        %s420 = sadd.s32 %s418, %s419
        %s421 = smul.addr %s420, 4
        %s422 = scalar_lea.vmem %s2, %s421
        %p423 = scmp.lt.s32.totalorder %s26, 0
        %s424 = scalar_select %p423, %s26, 0
        %p425 = scmp.lt.s32.totalorder %s27, 1
        %s426 = scalar_select %p425, %s27, 1
        %s427 = smul.addr %s424, 2
        %s428 = sadd.s32 %s426, %s427
        %s429 = smul.addr %s428, 4
        %s430 = scalar_lea.vmem %s3, %s429
        // Predicated region
        $region41: #{tpu_custom_call.1} parent=27 // pred_check
          %p431 = pneg %p120
        $region42: #{tpu_custom_call.1} parent=27 // pred_check_branch
          %433 = sbr.rel (%p431) target = $region44
        $region43: #{tpu_custom_call.1} parent=27 // pred_region
          _
        $region44: #{tpu_custom_call.1} parent=27 // pred_fallthru
          _
        // Predicated region
        $region45: #{tpu_custom_call.1} parent=27 // pred_check
          %p434 = pneg %p148
        $region46: #{tpu_custom_call.1} parent=27 // pred_check_branch
          %436 = sbr.rel (%p434) target = $region48
        $region47: #{tpu_custom_call.1} parent=27 // pred_region
          _
        $region48: #{tpu_custom_call.1} parent=27 // pred_fallthru
          _
      $region28: #{tpu_custom_call.1} parent=5 // pred_fallthru
        _
      %p437 = scmp.le.s32.totalorder 2, %s16
      // Predicated region
      $region49: #{tpu_custom_call.1} parent=5 // pred_check
        %p438 = pneg %p437
      $region50: #{tpu_custom_call.1} parent=5 // pred_check_branch
        %440 = sbr.rel (%p438) target = $region52
      $region51: #{tpu_custom_call.1} parent=5 // pred_region
        %s441 = ssub.s32 %s16, 2
        // Predicated region
        $region53: #{tpu_custom_call.1} parent=51 // pred_check
          %p442 = pneg %p126
        $region54: #{tpu_custom_call.1} parent=51 // pred_check_branch
          %444 = sbr.rel (%p442) target = $region56
        $region55: #{tpu_custom_call.1} parent=51 // pred_region
          %p445 = scmp.lt.s32.totalorder %s29, 0
          %s446 = scalar_select %p445, %s29, 0
          %p447 = scmp.lt.s32.totalorder %s30, 1
          %s448 = scalar_select %p447, %s30, 1
          %s449 = smul.addr %s446, 2
          %s450 = sadd.s32 %s448, %s449
          %s451 = smul.addr %s450, 4
          %s452 = scalar_lea.vmem %s2, %s451
        $region56: #{tpu_custom_call.1} parent=51 // pred_fallthru
          _
        // Predicated region
        $region57: #{tpu_custom_call.1} parent=51 // pred_check
          %p453 = pneg %p154
        $region58: #{tpu_custom_call.1} parent=51 // pred_check_branch
          %455 = sbr.rel (%p453) target = $region60
        $region59: #{tpu_custom_call.1} parent=51 // pred_region
          %p456 = scmp.lt.s32.totalorder %s29, 0
          %s457 = scalar_select %p456, %s29, 0
          %p458 = scmp.lt.s32.totalorder %s30, 1
          %s459 = scalar_select %p458, %s30, 1
          %s460 = smul.addr %s457, 2
          %s461 = sadd.s32 %s459, %s460
          %s462 = smul.addr %s461, 4
          %s463 = scalar_lea.vmem %s3, %s462
        $region60: #{tpu_custom_call.1} parent=51 // pred_fallthru
          _
      $region52: #{tpu_custom_call.1} parent=5 // pred_fallthru
        _
    $region6: #{tpu_custom_call.1} parent=1 // loop_footer
      %s20 = sadd.s32 1, %s16
    $region7: #{tpu_custom_call.1} parent=1 // loop_footer_branch
      %15 = sbr.rel target = $region3
    $region8: #{tpu_custom_call.1} parent=1 // loop_exit
      _
    %464 = vsyncpa [#allocation3], 1
    %s465 = scalar_lea.sflag [#allocation3], 1
    %466 = vsyncpa %s465, 1
    %467 = vsyncpa [#allocation5], 1
    %s468 = scalar_lea.sflag [#allocation5], 1
    %469 = vsyncpa %s468, 1

</llo_original>
